<compile_context>
chip_gen: v7x
topology: tpu7x:2x2x1
jax: 0.10.0
libtpu: 0.0.40
codegen_flags: <defaults>
</compile_context>

<pallas_src>
import jax
import jax.numpy as jnp
from jax.experimental import pallas as pl
from jax.experimental.pallas import tpu as pltpu

OUT_PAD = 128      # lane-dense padded width of the final (logical width 1) layer
TILE_B_MAX = 1024  # rows per batch tile (bf16 x tile = 1 MiB; safe on v7x 64 MiB VMEM)


def _round_up(n, m):
    return ((n + m - 1) // m) * m


def mlp_kernel(x_ref, w1_ref, b1_ref, w2_ref, b2_ref, w3_ref, b3_ref, o_ref):
    # Layer 1: [TB,512]bf16 @ [512,128]bf16 -> f32, +bias, ReLU (f32 VPU math)
    h1 = jnp.dot(x_ref[...], w1_ref[...], preferred_element_type=jnp.float32)
    h1 = jnp.maximum(h1 + b1_ref[...], 0.0)
    # Layer 2: [TB,128]bf16 @ [128,64]bf16 -> f32, +bias, ReLU
    h2 = jnp.dot(h1.astype(jnp.bfloat16), w2_ref[...],
                 preferred_element_type=jnp.float32)
    h2 = jnp.maximum(h2 + b2_ref[...], 0.0)
    # Layer 3 (lane-dense): [TB,64]bf16 @ [64,128]bf16 -> f32, +bias
    out = jnp.dot(h2.astype(jnp.bfloat16), w3_ref[...],
                  preferred_element_type=jnp.float32)
    o_ref[...] = (out + b3_ref[...]).astype(o_ref.dtype)


def dummy_model_forward(x, params):
    """x: [B, 512] float32. params: dict of pre-transposed weights/biases."""
    B, F = x.shape
    assert F == 512

    # bf16 matmul operands (f32 accumulation inside the kernel).
    w1 = params["w1"].astype(jnp.bfloat16)            # [512, 128]
    w2 = params["w2"].astype(jnp.bfloat16)            # [128, 64]
    b1 = params["b1"]                                  # [1, 128] f32
    b2 = params["b2"]                                  # [1, 64]  f32

    # Pad the final layer to a lane-dense width (128); column 0 carries the result.
    w3p = jnp.zeros((64, OUT_PAD), jnp.float32).at[:, :1].set(params["w3"])
    w3p = w3p.astype(jnp.bfloat16)                     # [64, 128]
    b3p = jnp.zeros((1, OUT_PAD), jnp.float32).at[:, :1].set(params["b3"])  # [1, 128]

    # Batch tiling: tile rows (multiple of 8), pad batch to a whole number of tiles.
    tile_b = min(TILE_B_MAX, _round_up(B, 8))
    Bp = _round_up(B, tile_b)
    xp = x if Bp == B else jnp.pad(x, ((0, Bp - B), (0, 0)))
    xp = xp.astype(jnp.bfloat16)

    grid = (Bp // tile_b,)

    out_padded = pl.pallas_call(
        mlp_kernel,
        out_shape=jax.ShapeDtypeStruct((Bp, OUT_PAD), jnp.float32),
        grid=grid,
        in_specs=[
            pl.BlockSpec((tile_b, 512), lambda i: (i, 0)),   # x: streamed per tile
            pl.BlockSpec((512, 128), lambda i: (0, 0)),       # w1: VMEM-resident
            pl.BlockSpec((1, 128), lambda i: (0, 0)),         # b1
            pl.BlockSpec((128, 64), lambda i: (0, 0)),        # w2
            pl.BlockSpec((1, 64), lambda i: (0, 0)),          # b2
            pl.BlockSpec((64, OUT_PAD), lambda i: (0, 0)),    # w3 (padded)
            pl.BlockSpec((1, OUT_PAD), lambda i: (0, 0)),     # b3 (padded)
        ],
        out_specs=pl.BlockSpec((tile_b, OUT_PAD), lambda i: (i, 0)),
        compiler_params=pltpu.CompilerParams(
            dimension_semantics=("parallel",),
        ),
    )(xp, w1, b1, w2, b2, w3p, b3p)

    # Drop batch padding and the lane padding (logical output width is 1).
    return out_padded[:B, :1]


def init_params(key):
    """Deterministic init mirroring nn.Linear shapes (weights stored transposed)."""
    ks = jax.random.split(key, 6)

    def linear(kw, kb, fan_in, fan_out):
        bound = 1.0 / jnp.sqrt(fan_in)
        # PyTorch stores weight as [out, in]; we store transposed [in, out].
        w = jax.random.uniform(kw, (fan_in, fan_out), jnp.float32, -bound, bound)
        b = jax.random.uniform(kb, (1, fan_out), jnp.float32, -bound, bound)
        return w, b

    w1, b1 = linear(ks[0], ks[1], 512, 128)
    w2, b2 = linear(ks[2], ks[3], 128, 64)
    w3, b3 = linear(ks[4], ks[5], 64, 1)
    return dict(w1=w1, b1=b1, w2=w2, b2=b2, w3=w3, b3=b3)


if __name__ == "__main__":
    key = jax.random.PRNGKey(0)
    k_params, k_x = jax.random.split(key)

    params = init_params(k_params)
    x = jax.random.normal(k_x, (8, 512), jnp.float32)  # batch=8, features=512

    out = dummy_model_forward(x, params)
    out = jax.block_until_ready(out)

    # Reference in plain JAX f32 (same math as the PyTorch Sequential).
    # Kernel uses bf16 matmul inputs, so compare with a bf16-appropriate tolerance.
    h = jnp.maximum(x @ params["w1"] + params["b1"], 0.0)
    h = jnp.maximum(h @ params["w2"] + params["b2"], 0.0)
    ref = h @ params["w3"] + params["b3"]

    assert out.shape == (8, 1)
    assert jnp.allclose(out, ref, atol=5e-2, rtol=5e-2), (
        f"max abs err = {jnp.max(jnp.abs(out - ref))}"
    )

    print("KERNEL_OK")
</pallas_src>

<mosaic_0001>
module attributes {stable_mosaic.version = 11 : i64} {
  func.func @mlp_kernel(%arg0: i32, %arg1: memref<8x512xbf16, #tpu.memory_space<vmem>>, %arg2: memref<512x128xbf16, #tpu.memory_space<vmem>>, %arg3: memref<1x128xf32, #tpu.memory_space<vmem>>, %arg4: memref<128x64xbf16, #tpu.memory_space<vmem>>, %arg5: memref<1x64xf32, #tpu.memory_space<vmem>>, %arg6: memref<64x128xbf16, #tpu.memory_space<vmem>>, %arg7: memref<1x128xf32, #tpu.memory_space<vmem>>, %arg8: memref<8x128xf32, #tpu.memory_space<vmem>>) attributes {dimension_semantics = [#tpu.dimension_semantics<parallel>], iteration_bounds = array<i64: 1>, scalar_prefetch = 0 : i64, scratch_operands = 0 : i64, tpu.core_type = #tpu.core_type<tc>, window_params = [{transform_indices = @transform_0, window_bounds = array<i64: 8, 512>}, {pipeline_mode = #tpu.pipeline_mode<synchronous>, transform_indices = @transform_1, window_bounds = array<i64: 512, 128>}, {pipeline_mode = #tpu.pipeline_mode<synchronous>, transform_indices = @transform_2, window_bounds = array<i64: 1, 128>}, {pipeline_mode = #tpu.pipeline_mode<synchronous>, transform_indices = @transform_3, window_bounds = array<i64: 128, 64>}, {pipeline_mode = #tpu.pipeline_mode<synchronous>, transform_indices = @transform_4, window_bounds = array<i64: 1, 64>}, {pipeline_mode = #tpu.pipeline_mode<synchronous>, transform_indices = @transform_5, window_bounds = array<i64: 64, 128>}, {pipeline_mode = #tpu.pipeline_mode<synchronous>, transform_indices = @transform_6, window_bounds = array<i64: 1, 128>}, {transform_indices = @transform_7, window_bounds = array<i64: 8, 128>}]} {
    %c0 = arith.constant 0 : index
    %c0_0 = arith.constant 0 : index
    %0 = vector.load %arg1[%c0, %c0_0] : memref<8x512xbf16, #tpu.memory_space<vmem>>, vector<8x512xbf16>
    %c0_1 = arith.constant 0 : index
    %c0_2 = arith.constant 0 : index
    %1 = vector.load %arg2[%c0_1, %c0_2] : memref<512x128xbf16, #tpu.memory_space<vmem>>, vector<512x128xbf16>
    %cst = arith.constant dense<0.000000e+00> : vector<8x128xf32>
    %2 = tpu.matmul %0, %1, %cst {dimension_numbers = #tpu.dot_dimension_numbers<[1], [0], [0], [1], [0, 0, 1, 1], [], []>} : vector<8x512xbf16>, vector<512x128xbf16>, vector<8x128xf32> -> vector<8x128xf32>
    %c0_3 = arith.constant 0 : index
    %c0_4 = arith.constant 0 : index
    %3 = vector.load %arg3[%c0_3, %c0_4] : memref<1x128xf32, #tpu.memory_space<vmem>>, vector<1x128xf32>
    %4 = vector.broadcast %3 : vector<1x128xf32> to vector<8x128xf32>
    %5 = arith.addf %2, %4 : vector<8x128xf32>
    %cst_5 = arith.constant 0.000000e+00 : f32
    %6 = vector.broadcast %cst_5 : f32 to vector<8x128xf32>
    %7 = arith.maximumf %5, %6 : vector<8x128xf32>
    %8 = arith.truncf %7 : vector<8x128xf32> to vector<8x128xbf16>
    %c0_6 = arith.constant 0 : index
    %c0_7 = arith.constant 0 : index
    %9 = vector.load %arg4[%c0_6, %c0_7] : memref<128x64xbf16, #tpu.memory_space<vmem>>, vector<128x64xbf16>
    %cst_8 = arith.constant dense<0.000000e+00> : vector<8x64xf32>
    %10 = tpu.matmul %8, %9, %cst_8 {dimension_numbers = #tpu.dot_dimension_numbers<[1], [0], [0], [1], [0, 0, 1, 1], [], []>} : vector<8x128xbf16>, vector<128x64xbf16>, vector<8x64xf32> -> vector<8x64xf32>
    %c0_9 = arith.constant 0 : index
    %c0_10 = arith.constant 0 : index
    %11 = vector.load %arg5[%c0_9, %c0_10] : memref<1x64xf32, #tpu.memory_space<vmem>>, vector<1x64xf32>
    %12 = vector.broadcast %11 : vector<1x64xf32> to vector<8x64xf32>
    %13 = arith.addf %10, %12 : vector<8x64xf32>
    %cst_11 = arith.constant 0.000000e+00 : f32
    %14 = vector.broadcast %cst_11 : f32 to vector<8x64xf32>
    %15 = arith.maximumf %13, %14 : vector<8x64xf32>
    %16 = arith.truncf %15 : vector<8x64xf32> to vector<8x64xbf16>
    %c0_12 = arith.constant 0 : index
    %c0_13 = arith.constant 0 : index
    %17 = vector.load %arg6[%c0_12, %c0_13] : memref<64x128xbf16, #tpu.memory_space<vmem>>, vector<64x128xbf16>
    %cst_14 = arith.constant dense<0.000000e+00> : vector<8x128xf32>
    %18 = tpu.matmul %16, %17, %cst_14 {dimension_numbers = #tpu.dot_dimension_numbers<[1], [0], [0], [1], [0, 0, 1, 1], [], []>} : vector<8x64xbf16>, vector<64x128xbf16>, vector<8x128xf32> -> vector<8x128xf32>
    %c0_15 = arith.constant 0 : index
    %c0_16 = arith.constant 0 : index
    %19 = vector.load %arg7[%c0_15, %c0_16] : memref<1x128xf32, #tpu.memory_space<vmem>>, vector<1x128xf32>
    %20 = vector.broadcast %19 : vector<1x128xf32> to vector<8x128xf32>
    %21 = arith.addf %18, %20 : vector<8x128xf32>
    %c0_17 = arith.constant 0 : index
    %c0_18 = arith.constant 0 : index
    %22 = vector.load %arg8[%c0_17, %c0_18] : memref<8x128xf32, #tpu.memory_space<vmem>>, vector<8x128xf32>
    tpu.vector_store %arg8[%c0_17, %c0_18], %21 {strides = array<i32>} : memref<8x128xf32, #tpu.memory_space<vmem>>, vector<8x128xf32>,
    return
  }
  func.func @transform_0(%arg0: i32) -> (i32, i32) {
    %c0_i32 = arith.constant 0 : i32
    %c0_i32_0 = arith.constant 0 : i32
    return %arg0, %c0_i32 : i32, i32
  }
  func.func @transform_1(%arg0: i32) -> (i32, i32) {
    %c0_i32 = arith.constant 0 : i32
    %c0_i32_0 = arith.constant 0 : i32
    %c0_i32_1 = arith.constant 0 : i32
    return %c0_i32, %c0_i32_0 : i32, i32
  }
  func.func @transform_2(%arg0: i32) -> (i32, i32) {
    %c0_i32 = arith.constant 0 : i32
    %c0_i32_0 = arith.constant 0 : i32
    %c0_i32_1 = arith.constant 0 : i32
    return %c0_i32, %c0_i32_0 : i32, i32
  }
  func.func @transform_3(%arg0: i32) -> (i32, i32) {
    %c0_i32 = arith.constant 0 : i32
    %c0_i32_0 = arith.constant 0 : i32
    %c0_i32_1 = arith.constant 0 : i32
    return %c0_i32, %c0_i32_0 : i32, i32
  }
  func.func @transform_4(%arg0: i32) -> (i32, i32) {
    %c0_i32 = arith.constant 0 : i32
    %c0_i32_0 = arith.constant 0 : i32
    %c0_i32_1 = arith.constant 0 : i32
    return %c0_i32, %c0_i32_0 : i32, i32
  }
  func.func @transform_5(%arg0: i32) -> (i32, i32) {
    %c0_i32 = arith.constant 0 : i32
    %c0_i32_0 = arith.constant 0 : i32
    %c0_i32_1 = arith.constant 0 : i32
    return %c0_i32, %c0_i32_0 : i32, i32
  }
  func.func @transform_6(%arg0: i32) -> (i32, i32) {
    %c0_i32 = arith.constant 0 : i32
    %c0_i32_0 = arith.constant 0 : i32
    %c0_i32_1 = arith.constant 0 : i32
    return %c0_i32, %c0_i32_0 : i32, i32
  }
  func.func @transform_7(%arg0: i32) -> (i32, i32) {
    %c0_i32 = arith.constant 0 : i32
    %c0_i32_0 = arith.constant 0 : i32
    return %arg0, %c0_i32 : i32, i32
  }
}

</mosaic_0001>

<llo_original>
// kernel: tpu_custom_call.1
$region0: #{tpu_custom_call.1}
  #allocation0 [shape = 'u32[]', space=smem, size = 0x4, offset = 0x4, fixed_abs, tag = 'smem constant byte address 0x4 - core index']
  #allocation1 [shape = 'u32[144,128]{1,0:T(1,128)}', space=vmem, size = 0x12000, scoped, tag = 'internal scratch']
  %s0 = inlined_call_operand.vmem [shape: bf16[8,512], index: 0, kind: input, shape index: {}]
  %s1 = inlined_call_operand.hbm [shape: bf16[512,128], index: 1, kind: input, shape index: {}]
  %s2 = inlined_call_operand.vmem [shape: f32[1,128], index: 2, kind: input, shape index: {}]
  %s3 = inlined_call_operand.vmem [shape: bf16[128,64], index: 3, kind: input, shape index: {}]
  %s4 = inlined_call_operand.vmem [shape: f32[1,64], index: 4, kind: input, shape index: {}]
  %s5 = inlined_call_operand.vmem [shape: bf16[64,128], index: 5, kind: input, shape index: {}]
  %s6 = inlined_call_operand.vmem [shape: f32[1,128], index: 6, kind: input, shape index: {}]
  %s7 = inlined_call_operand.hbm [shape: f32[8,128], index: 7, kind: output, shape index: {}]
  %s8 = sld [smem:[#allocation0]]
  $region42: #{tpu_custom_call.1} parent=0
    _
  %s10 = ssub.s32 1, %s8
  %s11 = scalar_select 0, %s10, %s8
  $region1: #{tpu_custom_call.1} parent=0
    #allocation2 [shape = 'u8[131072]{0}', space=vmem, size = 0x20000, scoped, tag = 'input window, operand 1, single buffered']
    #allocation3 [shape = 's32[1]{0}', space=sflag, size = 0x4, scoped, tag = 'scoped memory for tpu_custom_call.1']
    #allocation4 [shape = 's32[1]{0}', space=sflag, size = 0x4, scoped, tag = 'scoped memory for tpu_custom_call.1']
    #allocation5 [shape = 'u8[4096]{0}', space=vmem, size = 0x1000, scoped, tag = 'output window, operand 0, single buffered']
    %12 = vsyncpa [#allocation3], 0
    %13 = vsyncpa [#allocation4], 0
    // Predicated region
    $region2: #{tpu_custom_call.1} parent=1 // pred_check
      _
    $region3: #{tpu_custom_call.1} parent=1 // pred_check_branch
      %15 = sbr.rel (0) target = $region5
    $region4: #{tpu_custom_call.1} parent=1 // pred_region
      _
    $region5: #{tpu_custom_call.1} parent=1 // pred_fallthru
      _
    // Predicated region
    $region6: #{tpu_custom_call.1} parent=1 // pred_check
      _
    $region7: #{tpu_custom_call.1} parent=1 // pred_check_branch
      %17 = sbr.rel (0) target = $region9
    $region8: #{tpu_custom_call.1} parent=1 // pred_region
      %s19 = ssub.s32 4096, 4096
      %20 = vsyncadd [#allocation3], %s19
      %s21 = sshll.u32 [#allocation2], 4
      %s22 = int_to_ptr.vmem [resolvable:$true] %s21
      %27 = dma.hbm_to_vmem [thread:$0]  %s1, 4096, %s22, [#allocation3], 64, 64, 4
    $region9: #{tpu_custom_call.1} parent=1 // pred_fallthru
      _
    // Predicated region
    $region10: #{tpu_custom_call.1} parent=1 // pred_check
      _
    $region11: #{tpu_custom_call.1} parent=1 // pred_check_branch
      %29 = sbr.rel (0) target = $region13
    $region12: #{tpu_custom_call.1} parent=1 // pred_region
      _
    $region13: #{tpu_custom_call.1} parent=1 // pred_fallthru
      _
    // Predicated region
    $region14: #{tpu_custom_call.1} parent=1 // pred_check
      _
    $region15: #{tpu_custom_call.1} parent=1 // pred_check_branch
      %31 = sbr.rel (0) target = $region17
    $region16: #{tpu_custom_call.1} parent=1 // pred_region
      _
    $region17: #{tpu_custom_call.1} parent=1 // pred_fallthru
      _
    // Predicated region
    $region18: #{tpu_custom_call.1} parent=1 // pred_check
      _
    $region19: #{tpu_custom_call.1} parent=1 // pred_check_branch
      %33 = sbr.rel (0) target = $region21
    $region20: #{tpu_custom_call.1} parent=1 // pred_region
      _
    $region21: #{tpu_custom_call.1} parent=1 // pred_fallthru
      _
    // Predicated region
    $region22: #{tpu_custom_call.1} parent=1 // pred_check
      _
    $region23: #{tpu_custom_call.1} parent=1 // pred_check_branch
      %35 = sbr.rel (0) target = $region25
    $region24: #{tpu_custom_call.1} parent=1 // pred_region
      _
    $region25: #{tpu_custom_call.1} parent=1 // pred_fallthru
      _
    // Predicated region
    $region26: #{tpu_custom_call.1} parent=1 // pred_check
      _
    $region27: #{tpu_custom_call.1} parent=1 // pred_check_branch
      %37 = sbr.rel (0) target = $region29
    $region28: #{tpu_custom_call.1} parent=1 // pred_region
      _
    $region29: #{tpu_custom_call.1} parent=1 // pred_fallthru
      _
    // Predicated region
    $region30: #{tpu_custom_call.1} parent=1 // pred_check
      _
    $region31: #{tpu_custom_call.1} parent=1 // pred_check_branch
      %39 = sbr.rel (0) target = $region33
    $region32: #{tpu_custom_call.1} parent=1 // pred_region
      %40 = dma.done [#allocation3], 4096
    $region33: #{tpu_custom_call.1} parent=1 // pred_fallthru
      _
    %v42 = vld [vmem:[%s0] sm:$0xff]
    %v43 = vld [vmem:[%s0 + $0x8] sm:$0xff]
    %v44 = vld [vmem:[#allocation2] sm:$0xf]
    %v45 = vld [vmem:[#allocation2 + $0x4] sm:$0xf]
    %v46 = vld [vmem:[#allocation2 + $0x8] sm:$0xf]
    %v47 = vld [vmem:[#allocation2 + $0xc] sm:$0xf]
    %v48 = vld [vmem:[#allocation2 + $0x10] sm:$0xf]
    %v49 = vld [vmem:[#allocation2 + $0x14] sm:$0xf]
    %v50 = vld [vmem:[#allocation2 + $0x18] sm:$0xf]
    %v51 = vld [vmem:[#allocation2 + $0x1c] sm:$0xf]
    %v52 = vld [vmem:[#allocation2 + $0x20] sm:$0xf]
    %v53 = vld [vmem:[#allocation2 + $0x24] sm:$0xf]
    %v54 = vld [vmem:[#allocation2 + $0x28] sm:$0xf]
    %v55 = vld [vmem:[#allocation2 + $0x2c] sm:$0xf]
    %v56 = vld [vmem:[#allocation2 + $0x30] sm:$0xf]
    %v57 = vld [vmem:[#allocation2 + $0x34] sm:$0xf]
    %v58 = vld [vmem:[#allocation2 + $0x38] sm:$0xf]
    %v59 = vld [vmem:[#allocation2 + $0x3c] sm:$0xf]
    %v60 = vld [vmem:[#allocation2 + $0x40] sm:$0xf]
    %v61 = vld [vmem:[#allocation2 + $0x44] sm:$0xf]
    %v62 = vld [vmem:[#allocation2 + $0x48] sm:$0xf]
    %v63 = vld [vmem:[#allocation2 + $0x4c] sm:$0xf]
    %v64 = vld [vmem:[#allocation2 + $0x50] sm:$0xf]
    %v65 = vld [vmem:[#allocation2 + $0x54] sm:$0xf]
    %v66 = vld [vmem:[#allocation2 + $0x58] sm:$0xf]
    %v67 = vld [vmem:[#allocation2 + $0x5c] sm:$0xf]
    %v68 = vld [vmem:[#allocation2 + $0x60] sm:$0xf]
    %v69 = vld [vmem:[#allocation2 + $0x64] sm:$0xf]
    %v70 = vld [vmem:[#allocation2 + $0x68] sm:$0xf]
    %v71 = vld [vmem:[#allocation2 + $0x6c] sm:$0xf]
    %v72 = vld [vmem:[#allocation2 + $0x70] sm:$0xf]
    %v73 = vld [vmem:[#allocation2 + $0x74] sm:$0xf]
    %v74 = vld [vmem:[#allocation2 + $0x78] sm:$0xf]
    %v75 = vld [vmem:[#allocation2 + $0x7c] sm:$0xf]
    %v76 = vld [vmem:[#allocation2 + $0x80] sm:$0xf]
    %v77 = vld [vmem:[#allocation2 + $0x84] sm:$0xf]
    %v78 = vld [vmem:[#allocation2 + $0x88] sm:$0xf]
    %v79 = vld [vmem:[#allocation2 + $0x8c] sm:$0xf]
    %v80 = vld [vmem:[#allocation2 + $0x90] sm:$0xf]
    %v81 = vld [vmem:[#allocation2 + $0x94] sm:$0xf]
    %v82 = vld [vmem:[#allocation2 + $0x98] sm:$0xf]
    %v83 = vld [vmem:[#allocation2 + $0x9c] sm:$0xf]
    %v84 = vld [vmem:[#allocation2 + $0xa0] sm:$0xf]
    %v85 = vld [vmem:[#allocation2 + $0xa4] sm:$0xf]
    %v86 = vld [vmem:[#allocation2 + $0xa8] sm:$0xf]
    %v87 = vld [vmem:[#allocation2 + $0xac] sm:$0xf]
    %v88 = vld [vmem:[#allocation2 + $0xb0] sm:$0xf]
    %v89 = vld [vmem:[#allocation2 + $0xb4] sm:$0xf]
    %v90 = vld [vmem:[#allocation2 + $0xb8] sm:$0xf]
    %v91 = vld [vmem:[#allocation2 + $0xbc] sm:$0xf]
    %v92 = vld [vmem:[#allocation2 + $0xc0] sm:$0xf]
    %v93 = vld [vmem:[#allocation2 + $0xc4] sm:$0xf]
    %v94 = vld [vmem:[#allocation2 + $0xc8] sm:$0xf]
    %v95 = vld [vmem:[#allocation2 + $0xcc] sm:$0xf]
    %v96 = vld [vmem:[#allocation2 + $0xd0] sm:$0xf]
    %v97 = vld [vmem:[#allocation2 + $0xd4] sm:$0xf]
    %v98 = vld [vmem:[#allocation2 + $0xd8] sm:$0xf]
    %v99 = vld [vmem:[#allocation2 + $0xdc] sm:$0xf]
    %v100 = vld [vmem:[#allocation2 + $0xe0] sm:$0xf]
    %v101 = vld [vmem:[#allocation2 + $0xe4] sm:$0xf]
    %v102 = vld [vmem:[#allocation2 + $0xe8] sm:$0xf]
    %v103 = vld [vmem:[#allocation2 + $0xec] sm:$0xf]
    %v104 = vld [vmem:[#allocation2 + $0xf0] sm:$0xf]
    %v105 = vld [vmem:[#allocation2 + $0xf4] sm:$0xf]
    %v106 = vld [vmem:[#allocation2 + $0xf8] sm:$0xf]
    %v107 = vld [vmem:[#allocation2 + $0xfc] sm:$0xf]
    %v108 = vld [vmem:[%s2] sm:$0x1]
    %v110 = vlaneseq
    %v111 = vshrl.u32 %v110, 7
    %v112 = vsub.s32 0, %v111
    %v113 = vrot.slane %v108, %v112
    %v117 = vunpack.c.l.b16 %v42
    %v118 = vunpack.c.h.b16 %v42
    %v119 = vunpack.c.l.b16 %v43
    %v120 = vunpack.c.h.b16 %v43
    %v121 = vpack.c.b16 %v117, %v117
    %v122 = vpack.c.b16 %v118, %v118
    %v123 = vpack.c.b16 %v119, %v119
    %v124 = vpack.c.b16 %v120, %v120
    %v193 = vunpack.c.l.b16 %v44
    %v194 = vunpack.c.l.b16 %v45
    %v195 = vunpack.c.l.b16 %v46
    %v196 = vunpack.c.l.b16 %v47
    %v197 = vunpack.c.l.b16 %v48
    %v198 = vunpack.c.l.b16 %v49
    %v199 = vunpack.c.l.b16 %v50
    %v200 = vunpack.c.l.b16 %v51
    %v201 = vunpack.c.l.b16 %v52
    %v202 = vunpack.c.l.b16 %v53
    %v203 = vunpack.c.l.b16 %v54
    %v204 = vunpack.c.l.b16 %v55
    %v205 = vunpack.c.l.b16 %v56
    %v206 = vunpack.c.l.b16 %v57
    %v207 = vunpack.c.l.b16 %v58
    %v208 = vunpack.c.l.b16 %v59
    %v209 = vunpack.c.l.b16 %v60
    %v210 = vunpack.c.l.b16 %v61
    %v211 = vunpack.c.l.b16 %v62
    %v212 = vunpack.c.l.b16 %v63
    %v213 = vunpack.c.l.b16 %v64
    %v214 = vunpack.c.l.b16 %v65
    %v215 = vunpack.c.l.b16 %v66
    %v216 = vunpack.c.l.b16 %v67
    %v217 = vunpack.c.l.b16 %v68
    %v218 = vunpack.c.l.b16 %v69
    %v219 = vunpack.c.l.b16 %v70
    %v220 = vunpack.c.l.b16 %v71
    %v221 = vunpack.c.l.b16 %v72
    %v222 = vunpack.c.l.b16 %v73
    %v223 = vunpack.c.l.b16 %v74
    %v224 = vunpack.c.l.b16 %v75
    %v225 = vunpack.c.l.b16 %v76
    %v226 = vunpack.c.l.b16 %v77
    %v227 = vunpack.c.l.b16 %v78
    %v228 = vunpack.c.l.b16 %v79
    %v229 = vunpack.c.l.b16 %v80
    %v230 = vunpack.c.l.b16 %v81
    %v231 = vunpack.c.l.b16 %v82
    %v232 = vunpack.c.l.b16 %v83
    %v233 = vunpack.c.l.b16 %v84
    %v234 = vunpack.c.l.b16 %v85
    %v235 = vunpack.c.l.b16 %v86
    %v236 = vunpack.c.l.b16 %v87
    %v237 = vunpack.c.l.b16 %v88
    %v238 = vunpack.c.l.b16 %v89
    %v239 = vunpack.c.l.b16 %v90
    %v240 = vunpack.c.l.b16 %v91
    %v241 = vunpack.c.l.b16 %v92
    %v242 = vunpack.c.l.b16 %v93
    %v243 = vunpack.c.l.b16 %v94
    %v244 = vunpack.c.l.b16 %v95
    %v245 = vunpack.c.l.b16 %v96
    %v246 = vunpack.c.l.b16 %v97
    %v247 = vunpack.c.l.b16 %v98
    %v248 = vunpack.c.l.b16 %v99
    %v249 = vunpack.c.l.b16 %v100
    %v250 = vunpack.c.l.b16 %v101
    %v251 = vunpack.c.l.b16 %v102
    %v252 = vunpack.c.l.b16 %v103
    %v253 = vunpack.c.l.b16 %v104
    %v254 = vunpack.c.l.b16 %v105
    %v255 = vunpack.c.l.b16 %v106
    %v256 = vunpack.c.l.b16 %v107
    %v257 = vpack.c.b16 %v194, %v193
    %v258 = vpack.c.b16 %v196, %v195
    %v259 = vpack.c.b16 %v198, %v197
    %v260 = vpack.c.b16 %v200, %v199
    %v261 = vpack.c.b16 %v202, %v201
    %v262 = vpack.c.b16 %v204, %v203
    %v263 = vpack.c.b16 %v206, %v205
    %v264 = vpack.c.b16 %v208, %v207
    %v265 = vpack.c.b16 %v210, %v209
    %v266 = vpack.c.b16 %v212, %v211
    %v267 = vpack.c.b16 %v214, %v213
    %v268 = vpack.c.b16 %v216, %v215
    %v269 = vpack.c.b16 %v218, %v217
    %v270 = vpack.c.b16 %v220, %v219
    %v271 = vpack.c.b16 %v222, %v221
    %v272 = vpack.c.b16 %v224, %v223
    %v273 = vpack.c.b16 %v226, %v225
    %v274 = vpack.c.b16 %v228, %v227
    %v275 = vpack.c.b16 %v230, %v229
    %v276 = vpack.c.b16 %v232, %v231
    %v277 = vpack.c.b16 %v234, %v233
    %v278 = vpack.c.b16 %v236, %v235
    %v279 = vpack.c.b16 %v238, %v237
    %v280 = vpack.c.b16 %v240, %v239
    %v281 = vpack.c.b16 %v242, %v241
    %v282 = vpack.c.b16 %v244, %v243
    %v283 = vpack.c.b16 %v246, %v245
    %v284 = vpack.c.b16 %v248, %v247
    %v285 = vpack.c.b16 %v250, %v249
    %v286 = vpack.c.b16 %v252, %v251
    %v287 = vpack.c.b16 %v254, %v253
    %v288 = vpack.c.b16 %v256, %v255
    %321 = vmatprep.subr.bf16.mxu0 0
    %322 = vmatpush1.bf16.msra.mxu0 %v257
    %323 = vmatprep.subr.bf16.mxu0 0
    %324 = vmatpush1.bf16.msra.mxu0 %v258
    %325 = vmatprep.subr.bf16.mxu0 0
    %326 = vmatpush1.bf16.msra.mxu0 %v259
    %327 = vmatprep.subr.bf16.mxu0 0
    %328 = vmatpush1.bf16.msra.mxu0 %v260
    %329 = vmatprep.subr.bf16.mxu0 0
    %330 = vmatpush1.bf16.msra.mxu0 %v261
    %331 = vmatprep.subr.bf16.mxu0 0
    %332 = vmatpush1.bf16.msra.mxu0 %v262
    %333 = vmatprep.subr.bf16.mxu0 0
    %334 = vmatpush1.bf16.msra.mxu0 %v263
    %335 = vmatprep.subr.bf16.mxu0 0
    %336 = vmatpush1.bf16.msra.mxu0 %v264
    %337 = vmatprep.subr.bf16.mxu0 0
    %338 = vmatpush1.bf16.msra.mxu0 %v265
    %339 = vmatprep.subr.bf16.mxu0 0
    %340 = vmatpush1.bf16.msra.mxu0 %v266
    %341 = vmatprep.subr.bf16.mxu0 0
    %342 = vmatpush1.bf16.msra.mxu0 %v267
    %343 = vmatprep.subr.bf16.mxu0 0
    %344 = vmatpush1.bf16.msra.mxu0 %v268
    %345 = vmatprep.subr.bf16.mxu0 0
    %346 = vmatpush1.bf16.msra.mxu0 %v269
    %347 = vmatprep.subr.bf16.mxu0 0
    %348 = vmatpush1.bf16.msra.mxu0 %v270
    %349 = vmatprep.subr.bf16.mxu0 0
    %350 = vmatpush1.bf16.msra.mxu0 %v271
    %351 = vmatprep.subr.bf16.mxu0 0
    %352 = vmatpush1.bf16.msra.mxu0 %v272
    %353 = vmatprep.mubr.bf16.mxu0 %v122
    %354 = vmatmul.mubr.bf16.gmra.mrb[0].mxu0 %v121
    %v355 = vpop.f32.mrb[0].mxu0
    %v356 = vadd.f32 %v113, %v355
    %v357 = vpop.f32.mrb[0].mxu0
    %v358 = vpop.f32.mrb[0].mxu0
    %v359 = vpop.f32.mrb[0].mxu0
    %360 = vdwg.mxu0
    %361 = vmatprep.subr.bf16.mxu0 0
    %362 = vmatpush1.bf16.msra.mxu0 %v273
    %363 = vmatprep.subr.bf16.mxu0 0
    %364 = vmatpush1.bf16.msra.mxu0 %v274
    %365 = vmatprep.subr.bf16.mxu0 0
    %366 = vmatpush1.bf16.msra.mxu0 %v275
    %367 = vmatprep.subr.bf16.mxu0 0
    %368 = vmatpush1.bf16.msra.mxu0 %v276
    %369 = vmatprep.subr.bf16.mxu0 0
    %370 = vmatpush1.bf16.msra.mxu0 %v277
    %371 = vmatprep.subr.bf16.mxu0 0
    %372 = vmatpush1.bf16.msra.mxu0 %v278
    %373 = vmatprep.subr.bf16.mxu0 0
    %374 = vmatpush1.bf16.msra.mxu0 %v279
    %375 = vmatprep.subr.bf16.mxu0 0
    %376 = vmatpush1.bf16.msra.mxu0 %v280
    %377 = vmatprep.subr.bf16.mxu0 0
    %378 = vmatpush1.bf16.msra.mxu0 %v281
    %379 = vmatprep.subr.bf16.mxu0 0
    %380 = vmatpush1.bf16.msra.mxu0 %v282
    %381 = vmatprep.subr.bf16.mxu0 0
    %382 = vmatpush1.bf16.msra.mxu0 %v283
    %383 = vmatprep.subr.bf16.mxu0 0
    %384 = vmatpush1.bf16.msra.mxu0 %v284
    %385 = vmatprep.subr.bf16.mxu0 0
    %386 = vmatpush1.bf16.msra.mxu0 %v285
    %387 = vmatprep.subr.bf16.mxu0 0
    %388 = vmatpush1.bf16.msra.mxu0 %v286
    %389 = vmatprep.subr.bf16.mxu0 0
    %390 = vmatpush1.bf16.msra.mxu0 %v287
    %391 = vmatprep.subr.bf16.mxu0 0
    %392 = vmatpush1.bf16.msra.mxu0 %v288
    %393 = vmatprep.mubr.bf16.mxu0 %v124
    %394 = vmatmul.mubr.bf16.gmra.mrb[0].mxu0 %v123
    %v395 = vpop.f32.mrb[0].mxu0
    %v396 = vadd.f32 %v356, %v395
    %v397 = vpop.f32.mrb[0].mxu0
    %v398 = vpop.f32.mrb[0].mxu0
    %v399 = vpop.f32.mrb[0].mxu0
    %400 = vdwg.mxu0
    %v401 = vmax.f32 %v396, 0.0
    %v402 = vpack.c.bf16 %v401, %v401
    %v403 = vld [vmem:[%s3] sm:$0xf]
    %v404 = vld [vmem:[%s3 + $0x4] sm:$0xf]
    %v405 = vld [vmem:[%s3 + $0x8] sm:$0xf]
    %v406 = vld [vmem:[%s3 + $0xc] sm:$0xf]
    %v407 = vld [vmem:[%s3 + $0x10] sm:$0xf]
    %v408 = vld [vmem:[%s3 + $0x14] sm:$0xf]
    %v409 = vld [vmem:[%s3 + $0x18] sm:$0xf]
    %v410 = vld [vmem:[%s3 + $0x1c] sm:$0xf]
    %v411 = vld [vmem:[%s3 + $0x20] sm:$0xf]
    %v412 = vld [vmem:[%s3 + $0x24] sm:$0xf]
    %v413 = vld [vmem:[%s3 + $0x28] sm:$0xf]
    %v414 = vld [vmem:[%s3 + $0x2c] sm:$0xf]
    %v415 = vld [vmem:[%s3 + $0x30] sm:$0xf]
    %v416 = vld [vmem:[%s3 + $0x34] sm:$0xf]
    %v417 = vld [vmem:[%s3 + $0x38] sm:$0xf]
    %v418 = vld [vmem:[%s3 + $0x3c] sm:$0xf]
    %v419 = vld [vmem:[%s4] sm:$0x1]
    %v421 = vlaneseq
    %v422 = vshrl.u32 %v421, 7
    %v423 = vsub.s32 0, %v422
    %v424 = vrot.slane %v419, %v423
    %v442 = vunpack.c.l.b16 %v403
    %v443 = vunpack.c.l.b16 %v404
    %v444 = vunpack.c.l.b16 %v405
    %v445 = vunpack.c.l.b16 %v406
    %v446 = vunpack.c.l.b16 %v407
    %v447 = vunpack.c.l.b16 %v408
    %v448 = vunpack.c.l.b16 %v409
    %v449 = vunpack.c.l.b16 %v410
    %v450 = vunpack.c.l.b16 %v411
    %v451 = vunpack.c.l.b16 %v412
    %v452 = vunpack.c.l.b16 %v413
    %v453 = vunpack.c.l.b16 %v414
    %v454 = vunpack.c.l.b16 %v415
    %v455 = vunpack.c.l.b16 %v416
    %v456 = vunpack.c.l.b16 %v417
    %v457 = vunpack.c.l.b16 %v418
    %v458 = vpack.c.b16 %v443, %v442
    %v459 = vpack.c.b16 %v445, %v444
    %v460 = vpack.c.b16 %v447, %v446
    %v461 = vpack.c.b16 %v449, %v448
    %v462 = vpack.c.b16 %v451, %v450
    %v463 = vpack.c.b16 %v453, %v452
    %v464 = vpack.c.b16 %v455, %v454
    %v465 = vpack.c.b16 %v457, %v456
    %474 = vmatprep.subr.bf16.mxu0 0
    %475 = vmatpush1.bf16.msra.mxu0 %v458
    %476 = vmatprep.subr.bf16.mxu0 0
    %477 = vmatpush1.bf16.msra.mxu0 %v459
    %478 = vmatprep.subr.bf16.mxu0 0
    %479 = vmatpush1.bf16.msra.mxu0 %v460
    %480 = vmatprep.subr.bf16.mxu0 0
    %481 = vmatpush1.bf16.msra.mxu0 %v461
    %482 = vmatprep.subr.bf16.mxu0 0
    %483 = vmatpush1.bf16.msra.mxu0 %v462
    %484 = vmatprep.subr.bf16.mxu0 0
    %485 = vmatpush1.bf16.msra.mxu0 %v463
    %486 = vmatprep.subr.bf16.mxu0 0
    %487 = vmatpush1.bf16.msra.mxu0 %v464
    %488 = vmatprep.subr.bf16.mxu0 0
    %489 = vmatpush1.bf16.msra.mxu0 %v465
    %490 = vmatprep.subr.bf16.mxu0 0
    %491 = vmatpush1.bf16.msra.mxu0 0
    %492 = vmatprep.subr.bf16.mxu0 0
    %493 = vmatpush1.bf16.msra.mxu0 0
    %494 = vmatprep.subr.bf16.mxu0 0
    %495 = vmatpush1.bf16.msra.mxu0 0
    %496 = vmatprep.subr.bf16.mxu0 0
    %497 = vmatpush1.bf16.msra.mxu0 0
    %498 = vmatprep.subr.bf16.mxu0 0
    %499 = vmatpush1.bf16.msra.mxu0 0
    %500 = vmatprep.subr.bf16.mxu0 0
    %501 = vmatpush1.bf16.msra.mxu0 0
    %502 = vmatprep.subr.bf16.mxu0 0
    %503 = vmatpush1.bf16.msra.mxu0 0
    %504 = vmatprep.subr.bf16.mxu0 0
    %505 = vmatpush1.bf16.msra.mxu0 0
    %506 = vmatprep.mubr.bf16.mxu0 0
    %507 = vmatmul.mubr.bf16.gmra.mrb[0].mxu0 %v402
    %v508 = vpop.f32.mrb[0].mxu0
    %v509 = vadd.f32 %v424, %v508
    %v510 = vpop.f32.mrb[0].mxu0
    %v511 = vpop.f32.mrb[0].mxu0
    %v512 = vpop.f32.mrb[0].mxu0
    %513 = vdwg.mxu0
    %v514 = vmax.f32 %v509, 0.0
    %v515 = vpack.c.bf16 %v514, %v514
    %v516 = vld [vmem:[%s5] sm:$0xf]
    %v517 = vld [vmem:[%s5 + $0x4] sm:$0xf]
    %v518 = vld [vmem:[%s5 + $0x8] sm:$0xf]
    %v519 = vld [vmem:[%s5 + $0xc] sm:$0xf]
    %v520 = vld [vmem:[%s5 + $0x10] sm:$0xf]
    %v521 = vld [vmem:[%s5 + $0x14] sm:$0xf]
    %v522 = vld [vmem:[%s5 + $0x18] sm:$0xf]
    %v523 = vld [vmem:[%s5 + $0x1c] sm:$0xf]
    %v524 = vld [vmem:[%s6] sm:$0x1]
    %v526 = vlaneseq
    %v527 = vshrl.u32 %v526, 7
    %v528 = vsub.s32 0, %v527
    %v529 = vrot.slane %v524, %v528
    %v539 = vunpack.c.l.b16 %v516
    %v540 = vunpack.c.l.b16 %v517
    %v541 = vunpack.c.l.b16 %v518
    %v542 = vunpack.c.l.b16 %v519
    %v543 = vunpack.c.l.b16 %v520
    %v544 = vunpack.c.l.b16 %v521
    %v545 = vunpack.c.l.b16 %v522
    %v546 = vunpack.c.l.b16 %v523
    %v547 = vpack.c.b16 %v540, %v539
    %v548 = vpack.c.b16 %v542, %v541
    %v549 = vpack.c.b16 %v544, %v543
    %v550 = vpack.c.b16 %v546, %v545
    %vm555 = vcmask 523264
    %v557 = vsel %vm555, %v515, 0
    %559 = vmatprep.subr.bf16.mxu0 0
    %560 = vmatpush1.bf16.msra.mxu0 %v547
    %561 = vmatprep.subr.bf16.mxu0 0
    %562 = vmatpush1.bf16.msra.mxu0 %v548
    %563 = vmatprep.subr.bf16.mxu0 0
    %564 = vmatpush1.bf16.msra.mxu0 %v549
    %565 = vmatprep.subr.bf16.mxu0 0
    %566 = vmatpush1.bf16.msra.mxu0 %v550
    %567 = vmatprep.subr.bf16.mxu0 0
    %568 = vmatpush1.bf16.msra.mxu0 0
    %569 = vmatprep.subr.bf16.mxu0 0
    %570 = vmatpush1.bf16.msra.mxu0 0
    %571 = vmatprep.subr.bf16.mxu0 0
    %572 = vmatpush1.bf16.msra.mxu0 0
    %573 = vmatprep.subr.bf16.mxu0 0
    %574 = vmatpush1.bf16.msra.mxu0 0
    %575 = vmatprep.subr.bf16.mxu0 0
    %576 = vmatpush1.bf16.msra.mxu0 0
    %577 = vmatprep.subr.bf16.mxu0 0
    %578 = vmatpush1.bf16.msra.mxu0 0
    %579 = vmatprep.subr.bf16.mxu0 0
    %580 = vmatpush1.bf16.msra.mxu0 0
    %581 = vmatprep.subr.bf16.mxu0 0
    %582 = vmatpush1.bf16.msra.mxu0 0
    %583 = vmatprep.subr.bf16.mxu0 0
    %584 = vmatpush1.bf16.msra.mxu0 0
    %585 = vmatprep.subr.bf16.mxu0 0
    %586 = vmatpush1.bf16.msra.mxu0 0
    %587 = vmatprep.subr.bf16.mxu0 0
    %588 = vmatpush1.bf16.msra.mxu0 0
    %589 = vmatprep.subr.bf16.mxu0 0
    %590 = vmatpush1.bf16.msra.mxu0 0
    %591 = vmatprep.mubr.bf16.mxu0 0
    %592 = vmatmul.mubr.bf16.gmra.mrb[0].mxu0 %v557
    %v593 = vpop.f32.mrb[0].mxu0
    %v594 = vadd.f32 %v529, %v593
    %v595 = vpop.f32.mrb[0].mxu0
    %v596 = vpop.f32.mrb[0].mxu0
    %v597 = vpop.f32.mrb[0].mxu0
    %598 = vdwg.mxu0
    %599 = vst [vmem:[#allocation5] sm:$0xff] %v594
    // Predicated region
    $region34: #{tpu_custom_call.1} parent=1 // pred_check
      _
    $region35: #{tpu_custom_call.1} parent=1 // pred_check_branch
      %601 = sbr.rel (0) target = $region37
    $region36: #{tpu_custom_call.1} parent=1 // pred_region
      %s603 = ssub.s32 128, 128
      %604 = vsyncadd [#allocation4], %s603
      %s606 = sshll.u32 [#allocation5], 4
      %s607 = int_to_ptr.vmem [resolvable:$true] %s606
      %609 = dma.vmem_to_hbm [thread:$0]  %s607, 128, %s7, [#allocation4]
    $region37: #{tpu_custom_call.1} parent=1 // pred_fallthru
      _
    // Predicated region
    $region38: #{tpu_custom_call.1} parent=1 // pred_check
      _
    $region39: #{tpu_custom_call.1} parent=1 // pred_check_branch
      %611 = sbr.rel (0) target = $region41
    $region40: #{tpu_custom_call.1} parent=1 // pred_region
      %612 = dma.done [#allocation4], 128
    $region41: #{tpu_custom_call.1} parent=1 // pred_fallthru
      _
    %613 = vsyncpa [#allocation3], 1
    %614 = vsyncpa [#allocation4], 1

</llo_original>
